<compile_context>
chip_gen: v7x
topology: tpu7x:2x2x1
jax: 0.10.0
libtpu: 0.0.40
codegen_flags: <defaults>
</compile_context>

<pallas_src>
import jax
import jax.numpy as jnp
from jax.experimental import pallas as pl
from jax.experimental.pallas import tpu as pltpu


def _softplus(x):
    # PyTorch nn.Softplus (beta=1, threshold=20): x if x > 20 else log(1+exp(x))
    safe = jnp.minimum(x, 20.0)
    return jnp.where(x > 20.0, x, jnp.log(1.0 + jnp.exp(safe)))


def _hidden_encoder_kernel(h_ref, wm_ref, bm_ref, ws_ref, bs_ref,
                           mean_ref, std_ref):
    h = h_ref[...]                                             # (TB, H) f32

    mean = jnp.dot(h, wm_ref[...],
                   preferred_element_type=jnp.float32) + bm_ref[...]
    pre = jnp.dot(h, ws_ref[...],
                  preferred_element_type=jnp.float32) + bs_ref[...]

    mean_ref[...] = mean.astype(mean_ref.dtype)
    std_ref[...] = _softplus(pre).astype(std_ref.dtype)


def hidden_encoder_forward(h, params):
    """h: (..., h_dim) -> (mean, std), each (..., z_dim)."""
    orig_shape = h.shape
    H = orig_shape[-1]
    Z = params["wm"].shape[1]

    h2 = h.reshape(-1, H).astype(jnp.float32)
    B = h2.shape[0]

    # Sublane-aligned batch tile; 128-row tiles for large batches so the grid
    # axis can shard across TensorCores ("parallel") on v7x.
    TB = 8 if B <= 8 else 128
    Bp = pl.cdiv(B, TB) * TB
    if Bp != B:
        h2 = jnp.pad(h2, ((0, Bp - B), (0, 0)))

    wm = params["wm"].astype(jnp.float32)                      # (H, Z)
    bm = params["bm"].reshape(1, Z).astype(jnp.float32)        # (1, Z)
    ws = params["ws"].astype(jnp.float32)                      # (H, Z)
    bs = params["bs"].reshape(1, Z).astype(jnp.float32)        # (1, Z)

    const = lambda shape: pl.BlockSpec(shape, lambda i: (0, 0))

    mean_p, std_p = pl.pallas_call(
        _hidden_encoder_kernel,
        out_shape=(
            jax.ShapeDtypeStruct((Bp, Z), jnp.float32),
            jax.ShapeDtypeStruct((Bp, Z), jnp.float32),
        ),
        grid=(Bp // TB,),
        in_specs=[
            pl.BlockSpec((TB, H), lambda i: (i, 0)),           # h tile
            const((H, Z)),                                     # wm
            const((1, Z)),                                     # bm
            const((H, Z)),                                     # ws
            const((1, Z)),                                     # bs
        ],
        out_specs=(
            pl.BlockSpec((TB, Z), lambda i: (i, 0)),
            pl.BlockSpec((TB, Z), lambda i: (i, 0)),
        ),
        compiler_params=pltpu.CompilerParams(
            dimension_semantics=("parallel",)),
    )(h2, wm, bm, ws, bs)

    out_shape = orig_shape[:-1] + (Z,)
    mean = mean_p[:B].reshape(out_shape)
    std = std_p[:B].reshape(out_shape)
    return mean, std


def _init_params(key, h_dim, z_dim):
    ks = jax.random.split(key, 4)
    scale = 0.1
    return {
        # PyTorch Linear weights (out, in) stored pre-transposed as (in, out).
        "wm": scale * jax.random.normal(ks[0], (h_dim, z_dim), jnp.float32),
        "bm": scale * jax.random.normal(ks[1], (z_dim,), jnp.float32),
        "ws": scale * jax.random.normal(ks[2], (h_dim, z_dim), jnp.float32),
        "bs": scale * jax.random.normal(ks[3], (z_dim,), jnp.float32),
    }


def _reference_forward(h, params):
    """Pure-JAX reference matching the PyTorch module (Linear, Linear+Softplus)."""
    mean = h @ params["wm"] + params["bm"]
    std = _softplus(h @ params["ws"] + params["bs"])
    return mean, std


if __name__ == "__main__":
    key = jax.random.PRNGKey(0)
    k_h, k_p = jax.random.split(key)

    batch, h_dim, z_dim = 2, 32, 16
    h = jax.random.normal(k_h, (batch, h_dim), jnp.float32)
    params = _init_params(k_p, h_dim, z_dim)

    mean, std = hidden_encoder_forward(h, params)
    mean, std = jax.block_until_ready((mean, std))

    ref_mean, ref_std = _reference_forward(h, params)
    assert mean.shape == (batch, z_dim) and std.shape == (batch, z_dim)
    assert jnp.allclose(mean, ref_mean, atol=1e-5, rtol=1e-5), "mean mismatch"
    assert jnp.allclose(std, ref_std, atol=1e-5, rtol=1e-5), "std mismatch"
    assert bool(jnp.all(std > 0)), "std must be positive (softplus output)"

    print("KERNEL_OK")
</pallas_src>

<mosaic_0001>
module attributes {stable_mosaic.version = 11 : i64} {
  func.func @_hidden_encoder_kernel(%arg0: i32, %arg1: memref<8x32xf32, #tpu.memory_space<vmem>>, %arg2: memref<32x16xf32, #tpu.memory_space<vmem>>, %arg3: memref<1x16xf32, #tpu.memory_space<vmem>>, %arg4: memref<32x16xf32, #tpu.memory_space<vmem>>, %arg5: memref<1x16xf32, #tpu.memory_space<vmem>>, %arg6: memref<8x16xf32, #tpu.memory_space<vmem>>, %arg7: memref<8x16xf32, #tpu.memory_space<vmem>>) attributes {dimension_semantics = [#tpu.dimension_semantics<parallel>], iteration_bounds = array<i64: 1>, scalar_prefetch = 0 : i64, scratch_operands = 0 : i64, tpu.core_type = #tpu.core_type<tc>, window_params = [{transform_indices = @transform_0, window_bounds = array<i64: 8, 32>}, {pipeline_mode = #tpu.pipeline_mode<synchronous>, transform_indices = @transform_1, window_bounds = array<i64: 32, 16>}, {pipeline_mode = #tpu.pipeline_mode<synchronous>, transform_indices = @transform_2, window_bounds = array<i64: 1, 16>}, {pipeline_mode = #tpu.pipeline_mode<synchronous>, transform_indices = @transform_3, window_bounds = array<i64: 32, 16>}, {pipeline_mode = #tpu.pipeline_mode<synchronous>, transform_indices = @transform_4, window_bounds = array<i64: 1, 16>}, {transform_indices = @transform_5, window_bounds = array<i64: 8, 16>}, {transform_indices = @transform_6, window_bounds = array<i64: 8, 16>}]} {
    %c0 = arith.constant 0 : index
    %c0_0 = arith.constant 0 : index
    %0 = vector.load %arg1[%c0, %c0_0] : memref<8x32xf32, #tpu.memory_space<vmem>>, vector<8x32xf32>
    %c0_1 = arith.constant 0 : index
    %c0_2 = arith.constant 0 : index
    %1 = vector.load %arg2[%c0_1, %c0_2] : memref<32x16xf32, #tpu.memory_space<vmem>>, vector<32x16xf32>
    %cst = arith.constant dense<0.000000e+00> : vector<8x16xf32>
    %2 = tpu.matmul %0, %1, %cst {dimension_numbers = #tpu.dot_dimension_numbers<[1], [0], [0], [1], [0, 0, 1, 1], [], []>} : vector<8x32xf32>, vector<32x16xf32>, vector<8x16xf32> -> vector<8x16xf32>
    %c0_3 = arith.constant 0 : index
    %c0_4 = arith.constant 0 : index
    %3 = vector.load %arg3[%c0_3, %c0_4] : memref<1x16xf32, #tpu.memory_space<vmem>>, vector<1x16xf32>
    %4 = vector.broadcast %3 : vector<1x16xf32> to vector<8x16xf32>
    %5 = arith.addf %2, %4 : vector<8x16xf32>
    %c0_5 = arith.constant 0 : index
    %c0_6 = arith.constant 0 : index
    %6 = vector.load %arg4[%c0_5, %c0_6] : memref<32x16xf32, #tpu.memory_space<vmem>>, vector<32x16xf32>
    %cst_7 = arith.constant dense<0.000000e+00> : vector<8x16xf32>
    %7 = tpu.matmul %0, %6, %cst_7 {dimension_numbers = #tpu.dot_dimension_numbers<[1], [0], [0], [1], [0, 0, 1, 1], [], []>} : vector<8x32xf32>, vector<32x16xf32>, vector<8x16xf32> -> vector<8x16xf32>
    %c0_8 = arith.constant 0 : index
    %c0_9 = arith.constant 0 : index
    %8 = vector.load %arg5[%c0_8, %c0_9] : memref<1x16xf32, #tpu.memory_space<vmem>>, vector<1x16xf32>
    %9 = vector.broadcast %8 : vector<1x16xf32> to vector<8x16xf32>
    %10 = arith.addf %7, %9 : vector<8x16xf32>
    %c0_10 = arith.constant 0 : index
    %c0_11 = arith.constant 0 : index
    %11 = vector.load %arg6[%c0_10, %c0_11] : memref<8x16xf32, #tpu.memory_space<vmem>>, vector<8x16xf32>
    tpu.vector_store %arg6[%c0_10, %c0_11], %5 {strides = array<i32>} : memref<8x16xf32, #tpu.memory_space<vmem>>, vector<8x16xf32>,
    %cst_12 = arith.constant 2.000000e+01 : f32
    %12 = vector.broadcast %cst_12 : f32 to vector<8x16xf32>
    %13 = arith.minimumf %10, %12 : vector<8x16xf32>
    %cst_13 = arith.constant 2.000000e+01 : f32
    %14 = vector.broadcast %cst_13 : f32 to vector<8x16xf32>
    %15 = arith.cmpf ogt, %10, %14 : vector<8x16xf32>
    %16 = math.exp %13 : vector<8x16xf32>
    %cst_14 = arith.constant 1.000000e+00 : f32
    %17 = vector.broadcast %cst_14 : f32 to vector<8x16xf32>
    %18 = arith.addf %17, %16 : vector<8x16xf32>
    %19 = math.log %18 : vector<8x16xf32>
    %20 = arith.select %15, %10, %19 : vector<8x16xi1>, vector<8x16xf32>
    %c0_15 = arith.constant 0 : index
    %c0_16 = arith.constant 0 : index
    %21 = vector.load %arg7[%c0_15, %c0_16] : memref<8x16xf32, #tpu.memory_space<vmem>>, vector<8x16xf32>
    tpu.vector_store %arg7[%c0_15, %c0_16], %20 {strides = array<i32>} : memref<8x16xf32, #tpu.memory_space<vmem>>, vector<8x16xf32>,
    return
  }
  func.func @transform_0(%arg0: i32) -> (i32, i32) {
    %c0_i32 = arith.constant 0 : i32
    %c0_i32_0 = arith.constant 0 : i32
    return %arg0, %c0_i32 : i32, i32
  }
  func.func @transform_1(%arg0: i32) -> (i32, i32) {
    %c0_i32 = arith.constant 0 : i32
    %c0_i32_0 = arith.constant 0 : i32
    %c0_i32_1 = arith.constant 0 : i32
    return %c0_i32, %c0_i32_0 : i32, i32
  }
  func.func @transform_2(%arg0: i32) -> (i32, i32) {
    %c0_i32 = arith.constant 0 : i32
    %c0_i32_0 = arith.constant 0 : i32
    %c0_i32_1 = arith.constant 0 : i32
    return %c0_i32, %c0_i32_0 : i32, i32
  }
  func.func @transform_3(%arg0: i32) -> (i32, i32) {
    %c0_i32 = arith.constant 0 : i32
    %c0_i32_0 = arith.constant 0 : i32
    %c0_i32_1 = arith.constant 0 : i32
    return %c0_i32, %c0_i32_0 : i32, i32
  }
  func.func @transform_4(%arg0: i32) -> (i32, i32) {
    %c0_i32 = arith.constant 0 : i32
    %c0_i32_0 = arith.constant 0 : i32
    %c0_i32_1 = arith.constant 0 : i32
    return %c0_i32, %c0_i32_0 : i32, i32
  }
  func.func @transform_5(%arg0: i32) -> (i32, i32) {
    %c0_i32 = arith.constant 0 : i32
    %c0_i32_0 = arith.constant 0 : i32
    return %arg0, %c0_i32 : i32, i32
  }
  func.func @transform_6(%arg0: i32) -> (i32, i32) {
    %c0_i32 = arith.constant 0 : i32
    %c0_i32_0 = arith.constant 0 : i32
    return %arg0, %c0_i32 : i32, i32
  }
}

</mosaic_0001>

<llo_original>
// kernel: tpu_custom_call.1
$region0: #{tpu_custom_call.1}
  #allocation0 [shape = 'u32[]', space=smem, size = 0x4, offset = 0x4, fixed_abs, tag = 'smem constant byte address 0x4 - core index']
  #allocation1 [shape = 'u32[144,128]{1,0:T(1,128)}', space=vmem, size = 0x12000, scoped, tag = 'internal scratch']
  %s0 = inlined_call_operand.vmem [shape: f32[8,32], index: 0, kind: input, shape index: {}]
  %s1 = inlined_call_operand.vmem [shape: f32[32,16], index: 1, kind: input, shape index: {}]
  %s2 = inlined_call_operand.vmem [shape: f32[1,16], index: 2, kind: input, shape index: {}]
  %s3 = inlined_call_operand.vmem [shape: f32[32,16], index: 3, kind: input, shape index: {}]
  %s4 = inlined_call_operand.vmem [shape: f32[1,16], index: 4, kind: input, shape index: {}]
  %s5 = inlined_call_operand.hbm [shape: f32[8,16], index: 5, kind: output, shape index: {0}]
  %s6 = inlined_call_operand.hbm [shape: f32[8,16], index: 6, kind: output, shape index: {1}]
  %7 = xla_tuple %s5, %s6
  %s8 = sld [smem:[#allocation0]]
  $region38: #{tpu_custom_call.1} parent=0
    _
  %s10 = ssub.s32 1, %s8
  %s11 = scalar_select 0, %s10, %s8
  $region1: #{tpu_custom_call.1} parent=0
    #allocation2 [shape = 'u8[4096]{0}', space=vmem, size = 0x1000, scoped, tag = 'output window, operand 0, single buffered']
    #allocation3 [shape = 's32[1]{0}', space=sflag, size = 0x4, scoped, tag = 'scoped memory for tpu_custom_call.1']
    #allocation4 [shape = 'u8[4096]{0}', space=vmem, size = 0x1000, scoped, tag = 'output window, operand 1, single buffered']
    #allocation5 [shape = 's32[1]{0}', space=sflag, size = 0x4, scoped, tag = 'scoped memory for tpu_custom_call.1']
    %12 = vsyncpa [#allocation3], 0
    %13 = vsyncpa [#allocation5], 0
    // Predicated region
    $region2: #{tpu_custom_call.1} parent=1 // pred_check
      _
    $region3: #{tpu_custom_call.1} parent=1 // pred_check_branch
      %15 = sbr.rel (0) target = $region5
    $region4: #{tpu_custom_call.1} parent=1 // pred_region
      _
    $region5: #{tpu_custom_call.1} parent=1 // pred_fallthru
      _
    // Predicated region
    $region6: #{tpu_custom_call.1} parent=1 // pred_check
      _
    $region7: #{tpu_custom_call.1} parent=1 // pred_check_branch
      %17 = sbr.rel (0) target = $region9
    $region8: #{tpu_custom_call.1} parent=1 // pred_region
      _
    $region9: #{tpu_custom_call.1} parent=1 // pred_fallthru
      _
    // Predicated region
    $region10: #{tpu_custom_call.1} parent=1 // pred_check
      _
    $region11: #{tpu_custom_call.1} parent=1 // pred_check_branch
      %19 = sbr.rel (0) target = $region13
    $region12: #{tpu_custom_call.1} parent=1 // pred_region
      _
    $region13: #{tpu_custom_call.1} parent=1 // pred_fallthru
      _
    // Predicated region
    $region14: #{tpu_custom_call.1} parent=1 // pred_check
      _
    $region15: #{tpu_custom_call.1} parent=1 // pred_check_branch
      %21 = sbr.rel (0) target = $region17
    $region16: #{tpu_custom_call.1} parent=1 // pred_region
      _
    $region17: #{tpu_custom_call.1} parent=1 // pred_fallthru
      _
    // Predicated region
    $region18: #{tpu_custom_call.1} parent=1 // pred_check
      _
    $region19: #{tpu_custom_call.1} parent=1 // pred_check_branch
      %23 = sbr.rel (0) target = $region21
    $region20: #{tpu_custom_call.1} parent=1 // pred_region
      _
    $region21: #{tpu_custom_call.1} parent=1 // pred_fallthru
      _
    %v24 = vld [vmem:[%s0] sm:$0xff]
    %v25 = vld [vmem:[%s1] sm:$0xff]
    %v26 = vld [vmem:[%s1 + $0x8] sm:$0xff]
    %v27 = vld [vmem:[%s1 + $0x10] sm:$0xff]
    %v28 = vld [vmem:[%s1 + $0x18] sm:$0xff]
    %v29 = vld [vmem:[%s2] sm:$0x1]
    %v31 = vlaneseq
    %v32 = vshrl.u32 %v31, 7
    %v33 = vsub.s32 0, %v32
    %v34 = vrot.slane %v29, %v33
    %vm36 = vcmask 261120
    %v38 = vsel %vm36, %v24, 0
    %40 = vmatprep.subr.mxu0 0.0
    %41 = vmatpush1.msra.mxu0 %v25
    %42 = vmatprep.subr.mxu0 0.0
    %43 = vmatpush1.msra.mxu0 %v26
    %44 = vmatprep.subr.mxu0 0.0
    %45 = vmatpush1.msra.mxu0 %v27
    %46 = vmatprep.subr.mxu0 0.0
    %47 = vmatpush1.msra.mxu0 %v28
    %48 = vmatprep.subr.mxu0 0.0
    %49 = vmatpush1.msra.mxu0 0.0
    %50 = vmatprep.subr.mxu0 0.0
    %51 = vmatpush1.msra.mxu0 0.0
    %52 = vmatprep.subr.mxu0 0.0
    %53 = vmatpush1.msra.mxu0 0.0
    %54 = vmatprep.subr.mxu0 0.0
    %55 = vmatpush1.msra.mxu0 0.0
    %56 = vmatprep.subr.mxu0 0.0
    %57 = vmatpush1.msra.mxu0 0.0
    %58 = vmatprep.subr.mxu0 0.0
    %59 = vmatpush1.msra.mxu0 0.0
    %60 = vmatprep.subr.mxu0 0.0
    %61 = vmatpush1.msra.mxu0 0.0
    %62 = vmatprep.subr.mxu0 0.0
    %63 = vmatpush1.msra.mxu0 0.0
    %64 = vmatprep.subr.mxu0 0.0
    %65 = vmatpush1.msra.mxu0 0.0
    %66 = vmatprep.subr.mxu0 0.0
    %67 = vmatpush1.msra.mxu0 0.0
    %68 = vmatprep.subr.mxu0 0.0
    %69 = vmatpush1.msra.mxu0 0.0
    %70 = vmatprep.subr.mxu0 0.0
    %71 = vmatpush1.msra.mxu0 0.0
    %72 = vmatprep.subr.mxu0 0.0
    %73 = vmatpush1.msra.mxu0 0.0
    %74 = vmatprep.subr.mxu0 0.0
    %75 = vmatpush1.msra.mxu0 0.0
    %76 = vmatprep.subr.mxu0 0.0
    %77 = vmatpush1.msra.mxu0 0.0
    %78 = vmatprep.subr.mxu0 0.0
    %79 = vmatpush1.msra.mxu0 0.0
    %80 = vmatprep.subr.mxu0 0.0
    %81 = vmatpush1.msra.mxu0 0.0
    %82 = vmatprep.subr.mxu0 0.0
    %83 = vmatpush1.msra.mxu0 0.0
    %84 = vmatprep.subr.mxu0 0.0
    %85 = vmatpush1.msra.mxu0 0.0
    %86 = vmatprep.subr.mxu0 0.0
    %87 = vmatpush1.msra.mxu0 0.0
    %88 = vmatprep.subr.mxu0 0.0
    %89 = vmatpush1.msra.mxu0 0.0
    %90 = vmatprep.subr.mxu0 0.0
    %91 = vmatpush1.msra.mxu0 0.0
    %92 = vmatprep.subr.mxu0 0.0
    %93 = vmatpush1.msra.mxu0 0.0
    %94 = vmatprep.subr.mxu0 0.0
    %95 = vmatpush1.msra.mxu0 0.0
    %96 = vmatprep.subr.mxu0 0.0
    %97 = vmatpush1.msra.mxu0 0.0
    %98 = vmatprep.subr.mxu0 0.0
    %99 = vmatpush1.msra.mxu0 0.0
    %100 = vmatprep.subr.mxu0 0.0
    %101 = vmatpush1.msra.mxu0 0.0
    %102 = vmatprep.subr.mxu0 0.0
    %103 = vmatpush1.msra.mxu0 0.0
    %104 = vmatprep.mubr.f32.mxu0 0.0
    %105 = vmatmul.mubr.f32.gmra.mrb[0].mxu0 %v38
    %v106 = vpop.f32.mrb[0].mxu0
    %v107 = vadd.f32 %v34, %v106
    %v108 = vpop.f32.mrb[0].mxu0
    %109 = vdwg.mxu0
    %v110 = vld [vmem:[%s3] sm:$0xff]
    %v111 = vld [vmem:[%s3 + $0x8] sm:$0xff]
    %v112 = vld [vmem:[%s3 + $0x10] sm:$0xff]
    %v113 = vld [vmem:[%s3 + $0x18] sm:$0xff]
    %v114 = vld [vmem:[%s4] sm:$0x1]
    %v116 = vlaneseq
    %v117 = vshrl.u32 %v116, 7
    %v118 = vsub.s32 0, %v117
    %v119 = vrot.slane %v114, %v118
    %121 = vmatprep.subr.mxu0 0.0
    %122 = vmatpush1.msra.mxu0 %v110
    %123 = vmatprep.subr.mxu0 0.0
    %124 = vmatpush1.msra.mxu0 %v111
    %125 = vmatprep.subr.mxu0 0.0
    %126 = vmatpush1.msra.mxu0 %v112
    %127 = vmatprep.subr.mxu0 0.0
    %128 = vmatpush1.msra.mxu0 %v113
    %129 = vmatprep.subr.mxu0 0.0
    %130 = vmatpush1.msra.mxu0 0.0
    %131 = vmatprep.subr.mxu0 0.0
    %132 = vmatpush1.msra.mxu0 0.0
    %133 = vmatprep.subr.mxu0 0.0
    %134 = vmatpush1.msra.mxu0 0.0
    %135 = vmatprep.subr.mxu0 0.0
    %136 = vmatpush1.msra.mxu0 0.0
    %137 = vmatprep.subr.mxu0 0.0
    %138 = vmatpush1.msra.mxu0 0.0
    %139 = vmatprep.subr.mxu0 0.0
    %140 = vmatpush1.msra.mxu0 0.0
    %141 = vmatprep.subr.mxu0 0.0
    %142 = vmatpush1.msra.mxu0 0.0
    %143 = vmatprep.subr.mxu0 0.0
    %144 = vmatpush1.msra.mxu0 0.0
    %145 = vmatprep.subr.mxu0 0.0
    %146 = vmatpush1.msra.mxu0 0.0
    %147 = vmatprep.subr.mxu0 0.0
    %148 = vmatpush1.msra.mxu0 0.0
    %149 = vmatprep.subr.mxu0 0.0
    %150 = vmatpush1.msra.mxu0 0.0
    %151 = vmatprep.subr.mxu0 0.0
    %152 = vmatpush1.msra.mxu0 0.0
    %153 = vmatprep.subr.mxu0 0.0
    %154 = vmatpush1.msra.mxu0 0.0
    %155 = vmatprep.subr.mxu0 0.0
    %156 = vmatpush1.msra.mxu0 0.0
    %157 = vmatprep.subr.mxu0 0.0
    %158 = vmatpush1.msra.mxu0 0.0
    %159 = vmatprep.subr.mxu0 0.0
    %160 = vmatpush1.msra.mxu0 0.0
    %161 = vmatprep.subr.mxu0 0.0
    %162 = vmatpush1.msra.mxu0 0.0
    %163 = vmatprep.subr.mxu0 0.0
    %164 = vmatpush1.msra.mxu0 0.0
    %165 = vmatprep.subr.mxu0 0.0
    %166 = vmatpush1.msra.mxu0 0.0
    %167 = vmatprep.subr.mxu0 0.0
    %168 = vmatpush1.msra.mxu0 0.0
    %169 = vmatprep.subr.mxu0 0.0
    %170 = vmatpush1.msra.mxu0 0.0
    %171 = vmatprep.subr.mxu0 0.0
    %172 = vmatpush1.msra.mxu0 0.0
    %173 = vmatprep.subr.mxu0 0.0
    %174 = vmatpush1.msra.mxu0 0.0
    %175 = vmatprep.subr.mxu0 0.0
    %176 = vmatpush1.msra.mxu0 0.0
    %177 = vmatprep.subr.mxu0 0.0
    %178 = vmatpush1.msra.mxu0 0.0
    %179 = vmatprep.subr.mxu0 0.0
    %180 = vmatpush1.msra.mxu0 0.0
    %181 = vmatprep.subr.mxu0 0.0
    %182 = vmatpush1.msra.mxu0 0.0
    %183 = vmatprep.subr.mxu0 0.0
    %184 = vmatpush1.msra.mxu0 0.0
    %185 = vmatprep.mubr.f32.mxu0 0.0
    %186 = vmatmul.mubr.f32.gmra.mrb[0].mxu0 %v38
    %v187 = vpop.f32.mrb[0].mxu0
    %v188 = vadd.f32 %v119, %v187
    %v189 = vpop.f32.mrb[0].mxu0
    %190 = vdwg.mxu0
    %vm191 = vcmask 130048
    %192 = vst.msk [vmem:[#allocation2] sm:$0xff] %vm191, %v107
    %v193 = vmin.f32 %v188, 20.0
    %vm194 = vcmp.gt.f32.partialorder %v188, 20.0
    %v195 = vmul.f32 %v193, 1.442695
    %v196 = vpow.pop %v195
    %v197 = vadd.f32 %v196, 1.0
    %v198 = vlog2.pop %v197
    %v199 = vmul.f32 %v198, 0.6931472
    %v200 = vsel %vm194, %v188, %v199
    %201 = vst.msk [vmem:[#allocation4] sm:$0xff] %vm191, %v200
    // Predicated region
    $region22: #{tpu_custom_call.1} parent=1 // pred_check
      _
    $region23: #{tpu_custom_call.1} parent=1 // pred_check_branch
      %203 = sbr.rel (0) target = $region25
    $region24: #{tpu_custom_call.1} parent=1 // pred_region
      %s205 = ssub.s32 128, 128
      %206 = vsyncadd [#allocation3], %s205
      %s208 = sshll.u32 [#allocation2], 4
      %s209 = int_to_ptr.vmem [resolvable:$true] %s208
      %211 = dma.vmem_to_hbm [thread:$0]  %s209, 128, %s5, [#allocation3]
    $region25: #{tpu_custom_call.1} parent=1 // pred_fallthru
      _
    // Predicated region
    $region26: #{tpu_custom_call.1} parent=1 // pred_check
      _
    $region27: #{tpu_custom_call.1} parent=1 // pred_check_branch
      %213 = sbr.rel (0) target = $region29
    $region28: #{tpu_custom_call.1} parent=1 // pred_region
      %s215 = ssub.s32 128, 128
      %216 = vsyncadd [#allocation5], %s215
      %s218 = sshll.u32 [#allocation4], 4
      %s219 = int_to_ptr.vmem [resolvable:$true] %s218
      %221 = dma.vmem_to_hbm [thread:$0]  %s219, 128, %s6, [#allocation5]
    $region29: #{tpu_custom_call.1} parent=1 // pred_fallthru
      _
    // Predicated region
    $region30: #{tpu_custom_call.1} parent=1 // pred_check
      _
    $region31: #{tpu_custom_call.1} parent=1 // pred_check_branch
      %223 = sbr.rel (0) target = $region33
    $region32: #{tpu_custom_call.1} parent=1 // pred_region
      %224 = dma.done [#allocation3], 128
    $region33: #{tpu_custom_call.1} parent=1 // pred_fallthru
      _
    // Predicated region
    $region34: #{tpu_custom_call.1} parent=1 // pred_check
      _
    $region35: #{tpu_custom_call.1} parent=1 // pred_check_branch
      %226 = sbr.rel (0) target = $region37
    $region36: #{tpu_custom_call.1} parent=1 // pred_region
      %227 = dma.done [#allocation5], 128
    $region37: #{tpu_custom_call.1} parent=1 // pred_fallthru
      _
    %228 = vsyncpa [#allocation3], 1
    %229 = vsyncpa [#allocation5], 1

</llo_original>
